<compile_context>
chip_gen: v5e
topology: v5e:2x2
jax: 0.10.0
libtpu: 0.0.40
codegen_flags: <defaults>
</compile_context>

<pallas_src>
import functools

import jax
import jax.numpy as jnp
from jax.experimental import pallas as pl
from jax.experimental.pallas import tpu as pltpu

LANE = 128       # lane (last-dim) tiling unit
ROW_TILE = 512   # row tile for the grid path (sweep 512/1024; VMEM is tiny)

_VMEM_SPEC = pl.BlockSpec(memory_space=pltpu.MemorySpace.VMEM)


def _round_up(x, m):
    return (x + m - 1) // m * m


def _cost_estimate(m_total, d_model, d_pad, num_layers):
    flops = 2 * m_total * (d_model * d_pad + (num_layers - 1) * d_pad * d_pad)
    bytes_accessed = (m_total * d_model * 4                 # x in (f32)
                      + num_layers * d_pad * d_pad * 2      # weights (bf16)
                      + num_layers * d_pad * 4              # biases (f32)
                      + m_total * d_pad * 4)                # padded out (f32)
    return pl.CostEstimate(flops=flops, transcendentals=0,
                           bytes_accessed=bytes_accessed)


def _apply_layers(x, w_ref, b_ref, *, num_layers, d_in):
    """Run all encoder layers on one row slab; activation stays in VMEM/vregs.

    x     : (TM, d_in) float32 (unpadded feature dim)
    w_ref : (L, D, D) bf16 VMEM ref, rows/cols >= true dims are zero
    b_ref : (L, 1, D) f32 VMEM ref, entries >= true dim are zero
    returns (TM, D) float32
    """
    # Layer 0: K = d_in matmul against the first d_in rows of the padded W0,
    # so the unpadded input never needs lane-padding.
    h = jnp.dot(x.astype(jnp.bfloat16), w_ref[0, :d_in, :],
                preferred_element_type=jnp.float32)
    h = h + b_ref[0]
    if num_layers > 1:
        h = jnp.maximum(h, 0.0)
    # TODO(synk): for large num_layers use lax.fori_loop(..., unroll=True) with
    # dynamic w_ref[i]/b_ref[i] indexing to bound intermediate live ranges.
    for layer in range(1, num_layers):
        y = jnp.dot(h.astype(jnp.bfloat16), w_ref[layer],
                    preferred_element_type=jnp.float32) + b_ref[layer]
        if layer < num_layers - 1:
            y = jnp.maximum(y, 0.0)
        h = y
    return h


def _encoder_kernel_tiled(x_ref, w_ref, b_ref, o_ref, *, num_layers, d_model):
    """One row-tile of one stream through all layers (also used grid-less)."""
    o_ref[...] = _apply_layers(
        x_ref[...], w_ref, b_ref, num_layers=num_layers, d_in=d_model
    ).astype(o_ref.dtype)


def _encoder_kernel_small(x1_ref, x2_ref, x3_ref, w_ref, b_ref,
                          o1_ref, o2_ref, o3_ref, *, num_layers, d_model):
    """All three streams + all layers fused into one grid-less call."""
    for x_ref, o_ref in ((x1_ref, o1_ref), (x2_ref, o2_ref), (x3_ref, o3_ref)):
        o_ref[...] = _apply_layers(
            x_ref[...], w_ref, b_ref, num_layers=num_layers, d_in=d_model
        ).astype(o_ref.dtype)


def _encode_stream_padded(x2d, w_stack, b_stack):
    """x2d: (m, d_model) f32 -> (m, D) f32 lane-dense padded output."""
    m, d_model = x2d.shape
    num_layers, d_pad, _ = w_stack.shape
    kernel = functools.partial(_encoder_kernel_tiled,
                               num_layers=num_layers, d_model=d_model)
    cost = _cost_estimate(m, d_model, d_pad, num_layers)
    out_shape = jax.ShapeDtypeStruct((m, d_pad), x2d.dtype)

    if m <= ROW_TILE:
        # Small stream: grid-less, whole-array VMEM operands (no pipeline).
        return pl.pallas_call(
            kernel,
            out_shape=out_shape,
            in_specs=[_VMEM_SPEC, _VMEM_SPEC, _VMEM_SPEC],
            out_specs=_VMEM_SPEC,
            cost_estimate=cost,
        )(x2d, w_stack, b_stack)

    # Large stream: 1-D row grid; unpadded (ROW_TILE, d_model) input blocks,
    # lane-dense (ROW_TILE, D) output blocks, partial last tile via cdiv,
    # weights/biases whole-array in VMEM (not double-buffered).
    return pl.pallas_call(
        kernel,
        out_shape=out_shape,
        grid=(pl.cdiv(m, ROW_TILE),),
        in_specs=[
            pl.BlockSpec((ROW_TILE, d_model), lambda i: (i, 0)),
            _VMEM_SPEC,
            _VMEM_SPEC,
        ],
        out_specs=pl.BlockSpec((ROW_TILE, d_pad), lambda i: (i, 0)),
        compiler_params=pltpu.CompilerParams(
            dimension_semantics=("parallel",),
        ),
        cost_estimate=cost,
    )(x2d, w_stack, b_stack)


def init_encoder_params(key, d_model, num_layers):
    """One Linear(d_model, d_model) per cloned layer (nn.Linear default init).

    Returns (w_stack, b_stack, layers):
      w_stack: (L, D, D) bf16, D = round_up(d_model, 128), zero-padded,
               stored (in, out) so the forward is x @ W (== x @ W_pt.T)
      b_stack: (L, 1, D) f32, zero-padded
      layers : list of unpadded f32 (w, b) for the pure-JAX reference
    """
    d_pad = _round_up(d_model, LANE)
    bound = 1.0 / float(d_model) ** 0.5
    w_pad_list, b_pad_list, layers = [], [], []
    for _ in range(num_layers):
        key, kw, kb = jax.random.split(key, 3)
        w = jax.random.uniform(kw, (d_model, d_model), jnp.float32, -bound, bound)
        b = jax.random.uniform(kb, (d_model,), jnp.float32, -bound, bound)
        layers.append((w, b))
        w_pad_list.append(jnp.pad(w, ((0, d_pad - d_model), (0, d_pad - d_model))))
        b_pad_list.append(jnp.pad(b, (0, d_pad - d_model)).reshape(1, d_pad))
    w_stack = jnp.stack(w_pad_list).astype(jnp.bfloat16)   # streamed as bf16
    b_stack = jnp.stack(b_pad_list)                        # f32 (added to f32 acc)
    return w_stack, b_stack, layers


@jax.jit
def dca_encoder_forward(src1, src2, src3, w_stack, b_stack):
    """DCAEncoder.forward(src1, src2, src3) with the fused Pallas kernels.

    src*: (batch, seq_i, d_model) f32.  Returns (out1, out2, out3), same shapes.
    (pos_src1/2/3 of the reference forward are unused by the stand-in layer.)
    """
    d_model = src1.shape[-1]
    d_pad = w_stack.shape[-1]
    num_layers = w_stack.shape[0]
    srcs = (src1, src2, src3)
    rows = [s.reshape(-1, d_model) for s in srcs]          # free reshapes
    ms = [r.shape[0] for r in rows]

    if max(ms) <= ROW_TILE:
        # Common tracker case: everything fits in VMEM -> ONE fused call over
        # all three streams and all layers (single launch, no HBM intermediates).
        kernel = functools.partial(_encoder_kernel_small,
                                   num_layers=num_layers, d_model=d_model)
        outs_pad = pl.pallas_call(
            kernel,
            out_shape=tuple(jax.ShapeDtypeStruct((m, d_pad), r.dtype)
                            for m, r in zip(ms, rows)),
            in_specs=[_VMEM_SPEC] * 5,
            out_specs=(_VMEM_SPEC,) * 3,
            cost_estimate=_cost_estimate(sum(ms), d_model, d_pad, num_layers),
        )(rows[0], rows[1], rows[2], w_stack, b_stack)
    else:
        # Large streams: one row-tiled fused call per stream.
        outs_pad = tuple(_encode_stream_padded(r, w_stack, b_stack)
                         for r in rows)

    # Single lane-slice back to d_model (layout plumbing only) + reshape.
    return tuple(o[:, :d_model].reshape(s.shape)
                 for o, s in zip(outs_pad, srcs))


def dca_encoder_reference(src1, src2, src3, layers):
    num_layers = len(layers)
    outs = []
    for s in (src1, src2, src3):
        h = s
        for i, (w, b) in enumerate(layers):
            h = h @ w + b
            if i < num_layers - 1:
                h = jnp.maximum(h, 0.0)
        outs.append(h)
    return tuple(outs)


if __name__ == "__main__":
    d_model, num_layers = 32, 3
    batch, seq1, seq2, seq3 = 2, 16, 16, 64   # two template streams + search

    key = jax.random.PRNGKey(0)
    k1, k2, k3, kp = jax.random.split(key, 4)
    src1 = jax.random.normal(k1, (batch, seq1, d_model), jnp.float32)
    src2 = jax.random.normal(k2, (batch, seq2, d_model), jnp.float32)
    src3 = jax.random.normal(k3, (batch, seq3, d_model), jnp.float32)

    w_stack, b_stack, layers = init_encoder_params(kp, d_model, num_layers)

    # bf16-streamed weights/activations vs f32 reference -> relaxed tolerance.
    TOL = 5e-2

    # Small shapes -> single fused grid-less call over all three streams.
    outs = jax.block_until_ready(
        dca_encoder_forward(src1, src2, src3, w_stack, b_stack))
    refs = dca_encoder_reference(src1, src2, src3, layers)
    for o, r, s in zip(outs, refs, (src1, src2, src3)):
        assert o.shape == s.shape
        assert jnp.allclose(o, r, atol=TOL, rtol=TOL), \
            float(jnp.max(jnp.abs(o - r)))

    # Larger row counts -> exercise the per-stream paths:
    #   big1: M=512  -> grid-less per-stream call (exactly one tile)
    #   big2: M=600  -> tiled grid of 2 with a partial (88-row) last tile
    #   big3: M=1400 -> tiled grid of 3 with a partial last tile
    kb1, kb2, kb3 = jax.random.split(kp, 3)
    big1 = jax.random.normal(kb1, (2, 256, d_model), jnp.float32)
    big2 = jax.random.normal(kb2, (2, 300, d_model), jnp.float32)
    big3 = jax.random.normal(kb3, (2, 700, d_model), jnp.float32)
    bouts = jax.block_until_ready(
        dca_encoder_forward(big1, big2, big3, w_stack, b_stack))
    brefs = dca_encoder_reference(big1, big2, big3, layers)
    for o, r in zip(bouts, brefs):
        assert jnp.allclose(o, r, atol=TOL, rtol=TOL), \
            float(jnp.max(jnp.abs(o - r)))

    print("KERNEL_OK")
</pallas_src>

<mosaic_0001>
module attributes {stable_mosaic.version = 11 : i64} {
  func.func @_encoder_kernel_small(%arg0: memref<32x32xf32, #tpu.memory_space<vmem>>, %arg1: memref<32x32xf32, #tpu.memory_space<vmem>>, %arg2: memref<128x32xf32, #tpu.memory_space<vmem>>, %arg3: memref<3x128x128xbf16, #tpu.memory_space<vmem>>, %arg4: memref<3x1x128xf32, #tpu.memory_space<vmem>>, %arg5: memref<32x128xf32, #tpu.memory_space<vmem>>, %arg6: memref<32x128xf32, #tpu.memory_space<vmem>>, %arg7: memref<128x128xf32, #tpu.memory_space<vmem>>) attributes {dimension_semantics = [], scalar_prefetch = 0 : i64, scratch_operands = 0 : i64, tpu.core_type = #tpu.core_type<tc>} {
    %c0 = arith.constant 0 : index
    %c0_0 = arith.constant 0 : index
    %0 = vector.load %arg0[%c0, %c0_0] : memref<32x32xf32, #tpu.memory_space<vmem>>, vector<32x32xf32>
    %1 = arith.truncf %0 : vector<32x32xf32> to vector<32x32xbf16>
    %c0_1 = arith.constant 0 : index
    %c0_2 = arith.constant 0 : index
    %c0_3 = arith.constant 0 : index
    %2 = vector.load %arg3[%c0_1, %c0_2, %c0_3] : memref<3x128x128xbf16, #tpu.memory_space<vmem>>, vector<1x32x128xbf16>
    %3 = vector.shape_cast %2 : vector<1x32x128xbf16> to vector<32x128xbf16>
    %cst = arith.constant dense<0.000000e+00> : vector<32x128xf32>
    %4 = tpu.matmul %1, %3, %cst {dimension_numbers = #tpu.dot_dimension_numbers<[1], [0], [0], [1], [0, 0, 1, 1], [], []>} : vector<32x32xbf16>, vector<32x128xbf16>, vector<32x128xf32> -> vector<32x128xf32>
    %c0_4 = arith.constant 0 : index
    %c0_5 = arith.constant 0 : index
    %c0_6 = arith.constant 0 : index
    %5 = vector.load %arg4[%c0_4, %c0_5, %c0_6] : memref<3x1x128xf32, #tpu.memory_space<vmem>>, vector<1x1x128xf32>
    %6 = vector.shape_cast %5 : vector<1x1x128xf32> to vector<1x128xf32>
    %7 = vector.broadcast %6 : vector<1x128xf32> to vector<32x128xf32>
    %8 = arith.addf %4, %7 : vector<32x128xf32>
    %cst_7 = arith.constant 0.000000e+00 : f32
    %9 = vector.broadcast %cst_7 : f32 to vector<32x128xf32>
    %10 = arith.maximumf %8, %9 : vector<32x128xf32>
    %11 = arith.truncf %10 : vector<32x128xf32> to vector<32x128xbf16>
    %c1 = arith.constant 1 : index
    %c0_8 = arith.constant 0 : index
    %c0_9 = arith.constant 0 : index
    %12 = vector.load %arg3[%c1, %c0_8, %c0_9] : memref<3x128x128xbf16, #tpu.memory_space<vmem>>, vector<1x128x128xbf16>
    %13 = vector.shape_cast %12 : vector<1x128x128xbf16> to vector<128x128xbf16>
    %cst_10 = arith.constant dense<0.000000e+00> : vector<32x128xf32>
    %14 = tpu.matmul %11, %13, %cst_10 {dimension_numbers = #tpu.dot_dimension_numbers<[1], [0], [0], [1], [0, 0, 1, 1], [], []>} : vector<32x128xbf16>, vector<128x128xbf16>, vector<32x128xf32> -> vector<32x128xf32>
    %c1_11 = arith.constant 1 : index
    %c0_12 = arith.constant 0 : index
    %c0_13 = arith.constant 0 : index
    %15 = vector.load %arg4[%c1_11, %c0_12, %c0_13] : memref<3x1x128xf32, #tpu.memory_space<vmem>>, vector<1x1x128xf32>
    %16 = vector.shape_cast %15 : vector<1x1x128xf32> to vector<1x128xf32>
    %17 = vector.broadcast %16 : vector<1x128xf32> to vector<32x128xf32>
    %18 = arith.addf %14, %17 : vector<32x128xf32>
    %cst_14 = arith.constant 0.000000e+00 : f32
    %19 = vector.broadcast %cst_14 : f32 to vector<32x128xf32>
    %20 = arith.maximumf %18, %19 : vector<32x128xf32>
    %21 = arith.truncf %20 : vector<32x128xf32> to vector<32x128xbf16>
    %c2 = arith.constant 2 : index
    %c0_15 = arith.constant 0 : index
    %c0_16 = arith.constant 0 : index
    %22 = vector.load %arg3[%c2, %c0_15, %c0_16] : memref<3x128x128xbf16, #tpu.memory_space<vmem>>, vector<1x128x128xbf16>
    %23 = vector.shape_cast %22 : vector<1x128x128xbf16> to vector<128x128xbf16>
    %cst_17 = arith.constant dense<0.000000e+00> : vector<32x128xf32>
    %24 = tpu.matmul %21, %23, %cst_17 {dimension_numbers = #tpu.dot_dimension_numbers<[1], [0], [0], [1], [0, 0, 1, 1], [], []>} : vector<32x128xbf16>, vector<128x128xbf16>, vector<32x128xf32> -> vector<32x128xf32>
    %c2_18 = arith.constant 2 : index
    %c0_19 = arith.constant 0 : index
    %c0_20 = arith.constant 0 : index
    %25 = vector.load %arg4[%c2_18, %c0_19, %c0_20] : memref<3x1x128xf32, #tpu.memory_space<vmem>>, vector<1x1x128xf32>
    %26 = vector.shape_cast %25 : vector<1x1x128xf32> to vector<1x128xf32>
    %27 = vector.broadcast %26 : vector<1x128xf32> to vector<32x128xf32>
    %28 = arith.addf %24, %27 : vector<32x128xf32>
    %c0_21 = arith.constant 0 : index
    %c0_22 = arith.constant 0 : index
    %29 = vector.load %arg5[%c0_21, %c0_22] : memref<32x128xf32, #tpu.memory_space<vmem>>, vector<32x128xf32>
    tpu.vector_store %arg5[%c0_21, %c0_22], %28 {strides = array<i32>} : memref<32x128xf32, #tpu.memory_space<vmem>>, vector<32x128xf32>,
    %c0_23 = arith.constant 0 : index
    %c0_24 = arith.constant 0 : index
    %30 = vector.load %arg1[%c0_23, %c0_24] : memref<32x32xf32, #tpu.memory_space<vmem>>, vector<32x32xf32>
    %31 = arith.truncf %30 : vector<32x32xf32> to vector<32x32xbf16>
    %c0_25 = arith.constant 0 : index
    %c0_26 = arith.constant 0 : index
    %c0_27 = arith.constant 0 : index
    %32 = vector.load %arg3[%c0_25, %c0_26, %c0_27] : memref<3x128x128xbf16, #tpu.memory_space<vmem>>, vector<1x32x128xbf16>
    %33 = vector.shape_cast %32 : vector<1x32x128xbf16> to vector<32x128xbf16>
    %cst_28 = arith.constant dense<0.000000e+00> : vector<32x128xf32>
    %34 = tpu.matmul %31, %33, %cst_28 {dimension_numbers = #tpu.dot_dimension_numbers<[1], [0], [0], [1], [0, 0, 1, 1], [], []>} : vector<32x32xbf16>, vector<32x128xbf16>, vector<32x128xf32> -> vector<32x128xf32>
    %c0_29 = arith.constant 0 : index
    %c0_30 = arith.constant 0 : index
    %c0_31 = arith.constant 0 : index
    %35 = vector.load %arg4[%c0_29, %c0_30, %c0_31] : memref<3x1x128xf32, #tpu.memory_space<vmem>>, vector<1x1x128xf32>
    %36 = vector.shape_cast %35 : vector<1x1x128xf32> to vector<1x128xf32>
    %37 = vector.broadcast %36 : vector<1x128xf32> to vector<32x128xf32>
    %38 = arith.addf %34, %37 : vector<32x128xf32>
    %cst_32 = arith.constant 0.000000e+00 : f32
    %39 = vector.broadcast %cst_32 : f32 to vector<32x128xf32>
    %40 = arith.maximumf %38, %39 : vector<32x128xf32>
    %41 = arith.truncf %40 : vector<32x128xf32> to vector<32x128xbf16>
    %c1_33 = arith.constant 1 : index
    %c0_34 = arith.constant 0 : index
    %c0_35 = arith.constant 0 : index
    %42 = vector.load %arg3[%c1_33, %c0_34, %c0_35] : memref<3x128x128xbf16, #tpu.memory_space<vmem>>, vector<1x128x128xbf16>
    %43 = vector.shape_cast %42 : vector<1x128x128xbf16> to vector<128x128xbf16>
    %cst_36 = arith.constant dense<0.000000e+00> : vector<32x128xf32>
    %44 = tpu.matmul %41, %43, %cst_36 {dimension_numbers = #tpu.dot_dimension_numbers<[1], [0], [0], [1], [0, 0, 1, 1], [], []>} : vector<32x128xbf16>, vector<128x128xbf16>, vector<32x128xf32> -> vector<32x128xf32>
    %c1_37 = arith.constant 1 : index
    %c0_38 = arith.constant 0 : index
    %c0_39 = arith.constant 0 : index
    %45 = vector.load %arg4[%c1_37, %c0_38, %c0_39] : memref<3x1x128xf32, #tpu.memory_space<vmem>>, vector<1x1x128xf32>
    %46 = vector.shape_cast %45 : vector<1x1x128xf32> to vector<1x128xf32>
    %47 = vector.broadcast %46 : vector<1x128xf32> to vector<32x128xf32>
    %48 = arith.addf %44, %47 : vector<32x128xf32>
    %cst_40 = arith.constant 0.000000e+00 : f32
    %49 = vector.broadcast %cst_40 : f32 to vector<32x128xf32>
    %50 = arith.maximumf %48, %49 : vector<32x128xf32>
    %51 = arith.truncf %50 : vector<32x128xf32> to vector<32x128xbf16>
    %c2_41 = arith.constant 2 : index
    %c0_42 = arith.constant 0 : index
    %c0_43 = arith.constant 0 : index
    %52 = vector.load %arg3[%c2_41, %c0_42, %c0_43] : memref<3x128x128xbf16, #tpu.memory_space<vmem>>, vector<1x128x128xbf16>
    %53 = vector.shape_cast %52 : vector<1x128x128xbf16> to vector<128x128xbf16>
    %cst_44 = arith.constant dense<0.000000e+00> : vector<32x128xf32>
    %54 = tpu.matmul %51, %53, %cst_44 {dimension_numbers = #tpu.dot_dimension_numbers<[1], [0], [0], [1], [0, 0, 1, 1], [], []>} : vector<32x128xbf16>, vector<128x128xbf16>, vector<32x128xf32> -> vector<32x128xf32>
    %c2_45 = arith.constant 2 : index
    %c0_46 = arith.constant 0 : index
    %c0_47 = arith.constant 0 : index
    %55 = vector.load %arg4[%c2_45, %c0_46, %c0_47] : memref<3x1x128xf32, #tpu.memory_space<vmem>>, vector<1x1x128xf32>
    %56 = vector.shape_cast %55 : vector<1x1x128xf32> to vector<1x128xf32>
    %57 = vector.broadcast %56 : vector<1x128xf32> to vector<32x128xf32>
    %58 = arith.addf %54, %57 : vector<32x128xf32>
    %c0_48 = arith.constant 0 : index
    %c0_49 = arith.constant 0 : index
    %59 = vector.load %arg6[%c0_48, %c0_49] : memref<32x128xf32, #tpu.memory_space<vmem>>, vector<32x128xf32>
    tpu.vector_store %arg6[%c0_48, %c0_49], %58 {strides = array<i32>} : memref<32x128xf32, #tpu.memory_space<vmem>>, vector<32x128xf32>,
    %c0_50 = arith.constant 0 : index
    %c0_51 = arith.constant 0 : index
    %60 = vector.load %arg2[%c0_50, %c0_51] : memref<128x32xf32, #tpu.memory_space<vmem>>, vector<128x32xf32>
    %61 = arith.truncf %60 : vector<128x32xf32> to vector<128x32xbf16>
    %c0_52 = arith.constant 0 : index
    %c0_53 = arith.constant 0 : index
    %c0_54 = arith.constant 0 : index
    %62 = vector.load %arg3[%c0_52, %c0_53, %c0_54] : memref<3x128x128xbf16, #tpu.memory_space<vmem>>, vector<1x32x128xbf16>
    %63 = vector.shape_cast %62 : vector<1x32x128xbf16> to vector<32x128xbf16>
    %cst_55 = arith.constant dense<0.000000e+00> : vector<128x128xf32>
    %64 = tpu.matmul %61, %63, %cst_55 {dimension_numbers = #tpu.dot_dimension_numbers<[1], [0], [0], [1], [0, 0, 1, 1], [], []>} : vector<128x32xbf16>, vector<32x128xbf16>, vector<128x128xf32> -> vector<128x128xf32>
    %c0_56 = arith.constant 0 : index
    %c0_57 = arith.constant 0 : index
    %c0_58 = arith.constant 0 : index
    %65 = vector.load %arg4[%c0_56, %c0_57, %c0_58] : memref<3x1x128xf32, #tpu.memory_space<vmem>>, vector<1x1x128xf32>
    %66 = vector.shape_cast %65 : vector<1x1x128xf32> to vector<1x128xf32>
    %67 = vector.broadcast %66 : vector<1x128xf32> to vector<128x128xf32>
    %68 = arith.addf %64, %67 : vector<128x128xf32>
    %cst_59 = arith.constant 0.000000e+00 : f32
    %69 = vector.broadcast %cst_59 : f32 to vector<128x128xf32>
    %70 = arith.maximumf %68, %69 : vector<128x128xf32>
    %71 = arith.truncf %70 : vector<128x128xf32> to vector<128x128xbf16>
    %c1_60 = arith.constant 1 : index
    %c0_61 = arith.constant 0 : index
    %c0_62 = arith.constant 0 : index
    %72 = vector.load %arg3[%c1_60, %c0_61, %c0_62] : memref<3x128x128xbf16, #tpu.memory_space<vmem>>, vector<1x128x128xbf16>
    %73 = vector.shape_cast %72 : vector<1x128x128xbf16> to vector<128x128xbf16>
    %cst_63 = arith.constant dense<0.000000e+00> : vector<128x128xf32>
    %74 = tpu.matmul %71, %73, %cst_63 {dimension_numbers = #tpu.dot_dimension_numbers<[1], [0], [0], [1], [0, 0, 1, 1], [], []>} : vector<128x128xbf16>, vector<128x128xbf16>, vector<128x128xf32> -> vector<128x128xf32>
    %c1_64 = arith.constant 1 : index
    %c0_65 = arith.constant 0 : index
    %c0_66 = arith.constant 0 : index
    %75 = vector.load %arg4[%c1_64, %c0_65, %c0_66] : memref<3x1x128xf32, #tpu.memory_space<vmem>>, vector<1x1x128xf32>
    %76 = vector.shape_cast %75 : vector<1x1x128xf32> to vector<1x128xf32>
    %77 = vector.broadcast %76 : vector<1x128xf32> to vector<128x128xf32>
    %78 = arith.addf %74, %77 : vector<128x128xf32>
    %cst_67 = arith.constant 0.000000e+00 : f32
    %79 = vector.broadcast %cst_67 : f32 to vector<128x128xf32>
    %80 = arith.maximumf %78, %79 : vector<128x128xf32>
    %81 = arith.truncf %80 : vector<128x128xf32> to vector<128x128xbf16>
    %c2_68 = arith.constant 2 : index
    %c0_69 = arith.constant 0 : index
    %c0_70 = arith.constant 0 : index
    %82 = vector.load %arg3[%c2_68, %c0_69, %c0_70] : memref<3x128x128xbf16, #tpu.memory_space<vmem>>, vector<1x128x128xbf16>
    %83 = vector.shape_cast %82 : vector<1x128x128xbf16> to vector<128x128xbf16>
    %cst_71 = arith.constant dense<0.000000e+00> : vector<128x128xf32>
    %84 = tpu.matmul %81, %83, %cst_71 {dimension_numbers = #tpu.dot_dimension_numbers<[1], [0], [0], [1], [0, 0, 1, 1], [], []>} : vector<128x128xbf16>, vector<128x128xbf16>, vector<128x128xf32> -> vector<128x128xf32>
    %c2_72 = arith.constant 2 : index
    %c0_73 = arith.constant 0 : index
    %c0_74 = arith.constant 0 : index
    %85 = vector.load %arg4[%c2_72, %c0_73, %c0_74] : memref<3x1x128xf32, #tpu.memory_space<vmem>>, vector<1x1x128xf32>
    %86 = vector.shape_cast %85 : vector<1x1x128xf32> to vector<1x128xf32>
    %87 = vector.broadcast %86 : vector<1x128xf32> to vector<128x128xf32>
    %88 = arith.addf %84, %87 : vector<128x128xf32>
    %c0_75 = arith.constant 0 : index
    %c0_76 = arith.constant 0 : index
    %89 = vector.load %arg7[%c0_75, %c0_76] : memref<128x128xf32, #tpu.memory_space<vmem>>, vector<128x128xf32>
    tpu.vector_store %arg7[%c0_75, %c0_76], %88 {strides = array<i32>} : memref<128x128xf32, #tpu.memory_space<vmem>>, vector<128x128xf32>,
    return
  }
}

</mosaic_0001>

<llo_original>
// kernel: dca_encoder_forward.1
$region0: #{dca_encoder_forward.1}
  #allocation0 [shape = 'u32[]', space=smem, size = 0x4, offset = 0x4, fixed_abs, tag = 'smem constant byte address 0x4 - core index']
  #allocation1 [shape = 'u32[72,128]{1,0:T(1,128)}', space=vmem, size = 0x9000, scoped, tag = 'internal scratch']
  %s0 = inlined_call_operand.hbm [shape: f32[32,32], index: 0, kind: input, shape index: {}]
  %s1 = inlined_call_operand.hbm [shape: f32[32,32], index: 1, kind: input, shape index: {}]
  %s2 = inlined_call_operand.vmem [shape: f32[128,32], index: 2, kind: input, shape index: {}]
  %s3 = inlined_call_operand.vmem [shape: bf16[3,128,128], index: 3, kind: input, shape index: {}]
  %s4 = inlined_call_operand.vmem [shape: f32[3,1,128], index: 4, kind: input, shape index: {}]
  %s5 = inlined_call_operand.hbm [shape: f32[32,128], index: 5, kind: output, shape index: {0}]
  %s6 = inlined_call_operand.hbm [shape: f32[32,128], index: 6, kind: output, shape index: {1}]
  %s7 = inlined_call_operand.vmem [shape: f32[128,128], index: 7, kind: output, shape index: {2}]
  %8 = xla_tuple %s5, %s6, %s7
  %s9 = sld [smem:[#allocation0]]
  $region54: #{dca_encoder_forward.1} parent=0
    _
  %s11 = ssub.s32 1, %s9
  %s12 = scalar_select 0, %s11, %s9
  $region1: #{dca_encoder_forward.1} parent=0
    #allocation2 [shape = 'u8[16384]{0}', space=vmem, size = 0x4000, scoped, tag = 'input window, operand 0, single buffered']
    #allocation3 [shape = 's32[1]{0}', space=sflag, size = 0x4, scoped, tag = 'scoped memory for dca_encoder_forward.1']
    #allocation4 [shape = 's32[1]{0}', space=sflag, size = 0x4, scoped, tag = 'scoped memory for dca_encoder_forward.1']
    #allocation5 [shape = 'u8[16384]{0}', space=vmem, size = 0x4000, scoped, tag = 'input window, operand 1, single buffered']
    #allocation6 [shape = 's32[1]{0}', space=sflag, size = 0x4, scoped, tag = 'scoped memory for dca_encoder_forward.1']
    #allocation7 [shape = 'u8[16384]{0}', space=vmem, size = 0x4000, scoped, tag = 'output window, operand 0, single buffered']
    #allocation8 [shape = 'u8[16384]{0}', space=vmem, size = 0x4000, scoped, tag = 'output window, operand 1, single buffered']
    #allocation9 [shape = 's32[1]{0}', space=sflag, size = 0x4, scoped, tag = 'scoped memory for dca_encoder_forward.1']
    %13 = vsyncpa [#allocation3], 0
    %14 = vsyncpa [#allocation6], 0
    %15 = vsyncpa [#allocation4], 0
    %16 = vsyncpa [#allocation9], 0
    // Predicated region
    $region2: #{dca_encoder_forward.1} parent=1 // pred_check
      _
    $region3: #{dca_encoder_forward.1} parent=1 // pred_check_branch
      %18 = sbr.rel (0) target = $region5
    $region4: #{dca_encoder_forward.1} parent=1 // pred_region
      %20 = vsyncadd [#allocation3], 0
      %s21 = sshll.u32 %s0, 4
      %s22 = int_to_ptr.hbm [resolvable:$true] %s21
      %s23 = sshll.u32 [#allocation2], 4
      %s24 = int_to_ptr.vmem [resolvable:$true] %s23
      %29 = dma.hbm_to_vmem [thread:$0]  %s22, 512, %s24, [#allocation3], 128, 128, 8
    $region5: #{dca_encoder_forward.1} parent=1 // pred_fallthru
      _
    // Predicated region
    $region6: #{dca_encoder_forward.1} parent=1 // pred_check
      _
    $region7: #{dca_encoder_forward.1} parent=1 // pred_check_branch
      %31 = sbr.rel (0) target = $region9
    $region8: #{dca_encoder_forward.1} parent=1 // pred_region
      %33 = vsyncadd [#allocation6], 0
      %s34 = sshll.u32 %s1, 4
      %s35 = int_to_ptr.hbm [resolvable:$true] %s34
      %s36 = sshll.u32 [#allocation5], 4
      %s37 = int_to_ptr.vmem [resolvable:$true] %s36
      %42 = dma.hbm_to_vmem [thread:$0]  %s35, 512, %s37, [#allocation6], 128, 128, 8
    $region9: #{dca_encoder_forward.1} parent=1 // pred_fallthru
      _
    // Predicated region
    $region10: #{dca_encoder_forward.1} parent=1 // pred_check
      _
    $region11: #{dca_encoder_forward.1} parent=1 // pred_check_branch
      %44 = sbr.rel (0) target = $region13
    $region12: #{dca_encoder_forward.1} parent=1 // pred_region
      _
    $region13: #{dca_encoder_forward.1} parent=1 // pred_fallthru
      _
    // Predicated region
    $region14: #{dca_encoder_forward.1} parent=1 // pred_check
      _
    $region15: #{dca_encoder_forward.1} parent=1 // pred_check_branch
      %46 = sbr.rel (0) target = $region17
    $region16: #{dca_encoder_forward.1} parent=1 // pred_region
      _
    $region17: #{dca_encoder_forward.1} parent=1 // pred_fallthru
      _
    // Predicated region
    $region18: #{dca_encoder_forward.1} parent=1 // pred_check
      _
    $region19: #{dca_encoder_forward.1} parent=1 // pred_check_branch
      %48 = sbr.rel (0) target = $region21
    $region20: #{dca_encoder_forward.1} parent=1 // pred_region
      _
    $region21: #{dca_encoder_forward.1} parent=1 // pred_fallthru
      _
    // Predicated region
    $region22: #{dca_encoder_forward.1} parent=1 // pred_check
      _
    $region23: #{dca_encoder_forward.1} parent=1 // pred_check_branch
      %50 = sbr.rel (0) target = $region25
    $region24: #{dca_encoder_forward.1} parent=1 // pred_region
      %52 = dma.done [#allocation3], 512
    $region25: #{dca_encoder_forward.1} parent=1 // pred_fallthru
      _
    // Predicated region
    $region26: #{dca_encoder_forward.1} parent=1 // pred_check
      _
    $region27: #{dca_encoder_forward.1} parent=1 // pred_check_branch
      %54 = sbr.rel (0) target = $region29
    $region28: #{dca_encoder_forward.1} parent=1 // pred_region
      %56 = dma.done [#allocation6], 512
    $region29: #{dca_encoder_forward.1} parent=1 // pred_fallthru
      _
    %v58 = vld [vmem:[#allocation2] sm:$0xff]
    %v59 = vld [vmem:[#allocation2 + $0x8] sm:$0xff]
    %v60 = vld [vmem:[#allocation2 + $0x10] sm:$0xff]
    %v61 = vld [vmem:[#allocation2 + $0x18] sm:$0xff]
    %v62 = vpack.c.bf16 %v59, %v58
    %v63 = vpack.c.bf16 %v61, %v60
    %v64 = vld [vmem:[%s3] sm:$0xf]
    %v65 = vld [vmem:[%s3 + $0x4] sm:$0xf]
    %v66 = vld [vmem:[%s3 + $0x8] sm:$0xf]
    %v67 = vld [vmem:[%s3 + $0xc] sm:$0xf]
    %v68 = vld [vmem:[%s4] sm:$0x1]
    %v70 = vperm.slane %v68, 0
    %v76 = vunpack.c.l.b16 %v64
    %v77 = vunpack.c.l.b16 %v65
    %v78 = vunpack.c.l.b16 %v66
    %v79 = vunpack.c.l.b16 %v67
    %v80 = vpack.c.b16 %v77, %v76
    %v81 = vpack.c.b16 %v79, %v78
    %vm84 = vcmask 261120
    %v86 = vsel %vm84, %v62, 0
    %v89 = vsel %vm84, %v63, 0
    %91 = vmatpush.bf16.msra.mxu0 0
    %92 = vmatpush.bf16.msra.mxu0 0
    %93 = vmatpush.bf16.msra.mxu0 0
    %94 = vmatpush.bf16.msra.mxu0 0
    %95 = vmatpush.bf16.msra.mxu0 0
    %96 = vmatpush.bf16.msra.mxu0 0
    %97 = vmatpush.bf16.msra.mxu0 %v81
    %98 = vmatpush.bf16.msra.mxu0 %v80
    %99 = vmatmul.bf16.gmra.mxu0 %v86
    %v100 = vpop.f32.mrf.mxu0
    %v101 = vadd.f32 %v70, %v100
    %v102 = vpop.f32.mrf.mxu0
    %v103 = vadd.f32 %v70, %v102
    %104 = vmatmul.bf16.gmra.mxu0 %v89
    %v105 = vpop.f32.mrf.mxu0
    %v106 = vadd.f32 %v70, %v105
    %v107 = vpop.f32.mrf.mxu0
    %v108 = vadd.f32 %v70, %v107
    %109 = vdwg.mxu0
    %v110 = vmax.f32 %v101, 0.0
    %v111 = vmax.f32 %v103, 0.0
    %v112 = vmax.f32 %v106, 0.0
    %v113 = vmax.f32 %v108, 0.0
    %v114 = vpack.c.bf16 %v111, %v110
    %v115 = vpack.c.bf16 %v113, %v112
    %s116 = scalar_lea.vmem %s3, 64
    %v117 = vld [vmem:[%s116] sm:$0xf]
    %v118 = vld [vmem:[%s116 + $0x4] sm:$0xf]
    %v119 = vld [vmem:[%s116 + $0x8] sm:$0xf]
    %v120 = vld [vmem:[%s116 + $0xc] sm:$0xf]
    %v121 = vld [vmem:[%s116 + $0x10] sm:$0xf]
    %v122 = vld [vmem:[%s116 + $0x14] sm:$0xf]
    %v123 = vld [vmem:[%s116 + $0x18] sm:$0xf]
    %v124 = vld [vmem:[%s116 + $0x1c] sm:$0xf]
    %v125 = vld [vmem:[%s116 + $0x20] sm:$0xf]
    %v126 = vld [vmem:[%s116 + $0x24] sm:$0xf]
    %v127 = vld [vmem:[%s116 + $0x28] sm:$0xf]
    %v128 = vld [vmem:[%s116 + $0x2c] sm:$0xf]
    %v129 = vld [vmem:[%s116 + $0x30] sm:$0xf]
    %v130 = vld [vmem:[%s116 + $0x34] sm:$0xf]
    %v131 = vld [vmem:[%s116 + $0x38] sm:$0xf]
    %v132 = vld [vmem:[%s116 + $0x3c] sm:$0xf]
    %s133 = scalar_lea.vmem %s4, 1
    %v134 = vld [vmem:[%s133] sm:$0x1]
    %v136 = vperm.slane %v134, 0
    %v154 = vunpack.c.l.b16 %v117
    %v155 = vunpack.c.l.b16 %v118
    %v156 = vunpack.c.l.b16 %v119
    %v157 = vunpack.c.l.b16 %v120
    %v158 = vunpack.c.l.b16 %v121
    %v159 = vunpack.c.l.b16 %v122
    %v160 = vunpack.c.l.b16 %v123
    %v161 = vunpack.c.l.b16 %v124
    %v162 = vunpack.c.l.b16 %v125
    %v163 = vunpack.c.l.b16 %v126
    %v164 = vunpack.c.l.b16 %v127
    %v165 = vunpack.c.l.b16 %v128
    %v166 = vunpack.c.l.b16 %v129
    %v167 = vunpack.c.l.b16 %v130
    %v168 = vunpack.c.l.b16 %v131
    %v169 = vunpack.c.l.b16 %v132
    %v170 = vpack.c.b16 %v155, %v154
    %v171 = vpack.c.b16 %v157, %v156
    %v172 = vpack.c.b16 %v159, %v158
    %v173 = vpack.c.b16 %v161, %v160
    %v174 = vpack.c.b16 %v163, %v162
    %v175 = vpack.c.b16 %v165, %v164
    %v176 = vpack.c.b16 %v167, %v166
    %v177 = vpack.c.b16 %v169, %v168
    %186 = vmatpush.bf16.msra.mxu0 %v177
    %187 = vmatpush.bf16.msra.mxu0 %v176
    %188 = vmatpush.bf16.msra.mxu0 %v175
    %189 = vmatpush.bf16.msra.mxu0 %v174
    %190 = vmatpush.bf16.msra.mxu0 %v173
    %191 = vmatpush.bf16.msra.mxu0 %v172
    %192 = vmatpush.bf16.msra.mxu0 %v171
    %193 = vmatpush.bf16.msra.mxu0 %v170
    %194 = vmatmul.bf16.gmra.mxu0 %v114
    %v195 = vpop.f32.mrf.mxu0
    %v196 = vadd.f32 %v136, %v195
    %v197 = vpop.f32.mrf.mxu0
    %v198 = vadd.f32 %v136, %v197
    %199 = vmatmul.bf16.gmra.mxu0 %v115
    %v200 = vpop.f32.mrf.mxu0
    %v201 = vadd.f32 %v136, %v200
    %v202 = vpop.f32.mrf.mxu0
    %v203 = vadd.f32 %v136, %v202
    %204 = vdwg.mxu0
    %v205 = vmax.f32 %v196, 0.0
    %v206 = vmax.f32 %v198, 0.0
    %v207 = vmax.f32 %v201, 0.0
    %v208 = vmax.f32 %v203, 0.0
    %v209 = vpack.c.bf16 %v206, %v205
    %v210 = vpack.c.bf16 %v208, %v207
    %s211 = scalar_lea.vmem %s3, 128
    %v212 = vld [vmem:[%s211] sm:$0xf]
    %v213 = vld [vmem:[%s211 + $0x4] sm:$0xf]
    %v214 = vld [vmem:[%s211 + $0x8] sm:$0xf]
    %v215 = vld [vmem:[%s211 + $0xc] sm:$0xf]
    %v216 = vld [vmem:[%s211 + $0x10] sm:$0xf]
    %v217 = vld [vmem:[%s211 + $0x14] sm:$0xf]
    %v218 = vld [vmem:[%s211 + $0x18] sm:$0xf]
    %v219 = vld [vmem:[%s211 + $0x1c] sm:$0xf]
    %v220 = vld [vmem:[%s211 + $0x20] sm:$0xf]
    %v221 = vld [vmem:[%s211 + $0x24] sm:$0xf]
    %v222 = vld [vmem:[%s211 + $0x28] sm:$0xf]
    %v223 = vld [vmem:[%s211 + $0x2c] sm:$0xf]
    %v224 = vld [vmem:[%s211 + $0x30] sm:$0xf]
    %v225 = vld [vmem:[%s211 + $0x34] sm:$0xf]
    %v226 = vld [vmem:[%s211 + $0x38] sm:$0xf]
    %v227 = vld [vmem:[%s211 + $0x3c] sm:$0xf]
    %s228 = scalar_lea.vmem %s4, 2
    %v229 = vld [vmem:[%s228] sm:$0x1]
    %v231 = vperm.slane %v229, 0
    %v249 = vunpack.c.l.b16 %v212
    %v250 = vunpack.c.l.b16 %v213
    %v251 = vunpack.c.l.b16 %v214
    %v252 = vunpack.c.l.b16 %v215
    %v253 = vunpack.c.l.b16 %v216
    %v254 = vunpack.c.l.b16 %v217
    %v255 = vunpack.c.l.b16 %v218
    %v256 = vunpack.c.l.b16 %v219
    %v257 = vunpack.c.l.b16 %v220
    %v258 = vunpack.c.l.b16 %v221
    %v259 = vunpack.c.l.b16 %v222
    %v260 = vunpack.c.l.b16 %v223
    %v261 = vunpack.c.l.b16 %v224
    %v262 = vunpack.c.l.b16 %v225
    %v263 = vunpack.c.l.b16 %v226
    %v264 = vunpack.c.l.b16 %v227
    %v265 = vpack.c.b16 %v250, %v249
    %v266 = vpack.c.b16 %v252, %v251
    %v267 = vpack.c.b16 %v254, %v253
    %v268 = vpack.c.b16 %v256, %v255
    %v269 = vpack.c.b16 %v258, %v257
    %v270 = vpack.c.b16 %v260, %v259
    %v271 = vpack.c.b16 %v262, %v261
    %v272 = vpack.c.b16 %v264, %v263
    %281 = vmatpush.bf16.msra.mxu0 %v272
    %282 = vmatpush.bf16.msra.mxu0 %v271
    %283 = vmatpush.bf16.msra.mxu0 %v270
    %284 = vmatpush.bf16.msra.mxu0 %v269
    %285 = vmatpush.bf16.msra.mxu0 %v268
    %286 = vmatpush.bf16.msra.mxu0 %v267
    %287 = vmatpush.bf16.msra.mxu0 %v266
    %288 = vmatpush.bf16.msra.mxu0 %v265
    %289 = vmatmul.bf16.gmra.mxu0 %v209
    %v290 = vpop.f32.mrf.mxu0
    %v291 = vadd.f32 %v231, %v290
    %v292 = vpop.f32.mrf.mxu0
    %v293 = vadd.f32 %v231, %v292
    %294 = vmatmul.bf16.gmra.mxu0 %v210
    %v295 = vpop.f32.mrf.mxu0
    %v296 = vadd.f32 %v231, %v295
    %v297 = vpop.f32.mrf.mxu0
    %v298 = vadd.f32 %v231, %v297
    %299 = vdwg.mxu0
    %300 = vst [vmem:[#allocation7] sm:$0xff] %v291
    %301 = vst [vmem:[#allocation7 + $0x8] sm:$0xff] %v293
    %302 = vst [vmem:[#allocation7 + $0x10] sm:$0xff] %v296
    %303 = vst [vmem:[#allocation7 + $0x18] sm:$0xff] %v298
    %v304 = vld [vmem:[#allocation5] sm:$0xff]
    %v305 = vld [vmem:[#allocation5 + $0x8] sm:$0xff]
    %v306 = vld [vmem:[#allocation5 + $0x10] sm:$0xff]
    %v307 = vld [vmem:[#allocation5 + $0x18] sm:$0xff]
    %v308 = vpack.c.bf16 %v305, %v304
    %v309 = vpack.c.bf16 %v307, %v306
    %v310 = vld [vmem:[%s3] sm:$0xf]
    %v311 = vld [vmem:[%s3 + $0x4] sm:$0xf]
    %v312 = vld [vmem:[%s3 + $0x8] sm:$0xf]
    %v313 = vld [vmem:[%s3 + $0xc] sm:$0xf]
    %v314 = vld [vmem:[%s4] sm:$0x1]
    %v316 = vperm.slane %v314, 0
    %v322 = vunpack.c.l.b16 %v310
    %v323 = vunpack.c.l.b16 %v311
    %v324 = vunpack.c.l.b16 %v312
    %v325 = vunpack.c.l.b16 %v313
    %v326 = vpack.c.b16 %v323, %v322
    %v327 = vpack.c.b16 %v325, %v324
    %v331 = vsel %vm84, %v308, 0
    %v334 = vsel %vm84, %v309, 0
    %336 = vmatpush.bf16.msra.mxu0 0
    %337 = vmatpush.bf16.msra.mxu0 0
    %338 = vmatpush.bf16.msra.mxu0 0
    %339 = vmatpush.bf16.msra.mxu0 0
    %340 = vmatpush.bf16.msra.mxu0 0
    %341 = vmatpush.bf16.msra.mxu0 0
    %342 = vmatpush.bf16.msra.mxu0 %v327
    %343 = vmatpush.bf16.msra.mxu0 %v326
    %344 = vmatmul.bf16.gmra.mxu0 %v331
    %v345 = vpop.f32.mrf.mxu0
    %v346 = vadd.f32 %v316, %v345
    %v347 = vpop.f32.mrf.mxu0
    %v348 = vadd.f32 %v316, %v347
    %349 = vmatmul.bf16.gmra.mxu0 %v334
    %v350 = vpop.f32.mrf.mxu0
    %v351 = vadd.f32 %v316, %v350
    %v352 = vpop.f32.mrf.mxu0
    %v353 = vadd.f32 %v316, %v352
    %354 = vdwg.mxu0
    %v355 = vmax.f32 %v346, 0.0
    %v356 = vmax.f32 %v348, 0.0
    %v357 = vmax.f32 %v351, 0.0
    %v358 = vmax.f32 %v353, 0.0
    %v359 = vpack.c.bf16 %v356, %v355
    %v360 = vpack.c.bf16 %v358, %v357
    %v361 = vld [vmem:[%s116] sm:$0xf]
    %v362 = vld [vmem:[%s116 + $0x4] sm:$0xf]
    %v363 = vld [vmem:[%s116 + $0x8] sm:$0xf]
    %v364 = vld [vmem:[%s116 + $0xc] sm:$0xf]
    %v365 = vld [vmem:[%s116 + $0x10] sm:$0xf]
    %v366 = vld [vmem:[%s116 + $0x14] sm:$0xf]
    %v367 = vld [vmem:[%s116 + $0x18] sm:$0xf]
    %v368 = vld [vmem:[%s116 + $0x1c] sm:$0xf]
    %v369 = vld [vmem:[%s116 + $0x20] sm:$0xf]
    %v370 = vld [vmem:[%s116 + $0x24] sm:$0xf]
    %v371 = vld [vmem:[%s116 + $0x28] sm:$0xf]
    %v372 = vld [vmem:[%s116 + $0x2c] sm:$0xf]
    %v373 = vld [vmem:[%s116 + $0x30] sm:$0xf]
    %v374 = vld [vmem:[%s116 + $0x34] sm:$0xf]
    %v375 = vld [vmem:[%s116 + $0x38] sm:$0xf]
    %v376 = vld [vmem:[%s116 + $0x3c] sm:$0xf]
    %v377 = vld [vmem:[%s133] sm:$0x1]
    %v379 = vperm.slane %v377, 0
    %v397 = vunpack.c.l.b16 %v361
    %v398 = vunpack.c.l.b16 %v362
    %v399 = vunpack.c.l.b16 %v363
    %v400 = vunpack.c.l.b16 %v364
    %v401 = vunpack.c.l.b16 %v365
    %v402 = vunpack.c.l.b16 %v366
    %v403 = vunpack.c.l.b16 %v367
    %v404 = vunpack.c.l.b16 %v368
    %v405 = vunpack.c.l.b16 %v369
    %v406 = vunpack.c.l.b16 %v370
    %v407 = vunpack.c.l.b16 %v371
    %v408 = vunpack.c.l.b16 %v372
    %v409 = vunpack.c.l.b16 %v373
    %v410 = vunpack.c.l.b16 %v374
    %v411 = vunpack.c.l.b16 %v375
    %v412 = vunpack.c.l.b16 %v376
    %v413 = vpack.c.b16 %v398, %v397
    %v414 = vpack.c.b16 %v400, %v399
    %v415 = vpack.c.b16 %v402, %v401
    %v416 = vpack.c.b16 %v404, %v403
    %v417 = vpack.c.b16 %v406, %v405
    %v418 = vpack.c.b16 %v408, %v407
    %v419 = vpack.c.b16 %v410, %v409
    %v420 = vpack.c.b16 %v412, %v411
    %429 = vmatpush.bf16.msra.mxu0 %v420
    %430 = vmatpush.bf16.msra.mxu0 %v419
    %431 = vmatpush.bf16.msra.mxu0 %v418
    %432 = vmatpush.bf16.msra.mxu0 %v417
    %433 = vmatpush.bf16.msra.mxu0 %v416
    %434 = vmatpush.bf16.msra.mxu0 %v415
    %435 = vmatpush.bf16.msra.mxu0 %v414
    %436 = vmatpush.bf16.msra.mxu0 %v413
    %437 = vmatmul.bf16.gmra.mxu0 %v359
    %v438 = vpop.f32.mrf.mxu0
    %v439 = vadd.f32 %v379, %v438
    %v440 = vpop.f32.mrf.mxu0
    %v441 = vadd.f32 %v379, %v440
    %442 = vmatmul.bf16.gmra.mxu0 %v360
    %v443 = vpop.f32.mrf.mxu0
    %v444 = vadd.f32 %v379, %v443
    %v445 = vpop.f32.mrf.mxu0
    %v446 = vadd.f32 %v379, %v445
    %447 = vdwg.mxu0
    %v448 = vmax.f32 %v439, 0.0
    %v449 = vmax.f32 %v441, 0.0
    %v450 = vmax.f32 %v444, 0.0
    %v451 = vmax.f32 %v446, 0.0
    %v452 = vpack.c.bf16 %v449, %v448
    %v453 = vpack.c.bf16 %v451, %v450
    %v454 = vld [vmem:[%s211] sm:$0xf]
    %v455 = vld [vmem:[%s211 + $0x4] sm:$0xf]
    %v456 = vld [vmem:[%s211 + $0x8] sm:$0xf]
    %v457 = vld [vmem:[%s211 + $0xc] sm:$0xf]
    %v458 = vld [vmem:[%s211 + $0x10] sm:$0xf]
    %v459 = vld [vmem:[%s211 + $0x14] sm:$0xf]
    %v460 = vld [vmem:[%s211 + $0x18] sm:$0xf]
    %v461 = vld [vmem:[%s211 + $0x1c] sm:$0xf]
    %v462 = vld [vmem:[%s211 + $0x20] sm:$0xf]
    %v463 = vld [vmem:[%s211 + $0x24] sm:$0xf]
    %v464 = vld [vmem:[%s211 + $0x28] sm:$0xf]
    %v465 = vld [vmem:[%s211 + $0x2c] sm:$0xf]
    %v466 = vld [vmem:[%s211 + $0x30] sm:$0xf]
    %v467 = vld [vmem:[%s211 + $0x34] sm:$0xf]
    %v468 = vld [vmem:[%s211 + $0x38] sm:$0xf]
    %v469 = vld [vmem:[%s211 + $0x3c] sm:$0xf]
    %v470 = vld [vmem:[%s228] sm:$0x1]
    %v472 = vperm.slane %v470, 0
    %v490 = vunpack.c.l.b16 %v454
    %v491 = vunpack.c.l.b16 %v455
    %v492 = vunpack.c.l.b16 %v456
    %v493 = vunpack.c.l.b16 %v457
    %v494 = vunpack.c.l.b16 %v458
    %v495 = vunpack.c.l.b16 %v459
    %v496 = vunpack.c.l.b16 %v460
    %v497 = vunpack.c.l.b16 %v461
    %v498 = vunpack.c.l.b16 %v462
    %v499 = vunpack.c.l.b16 %v463
    %v500 = vunpack.c.l.b16 %v464
    %v501 = vunpack.c.l.b16 %v465
    %v502 = vunpack.c.l.b16 %v466
    %v503 = vunpack.c.l.b16 %v467
    %v504 = vunpack.c.l.b16 %v468
    %v505 = vunpack.c.l.b16 %v469
    %v506 = vpack.c.b16 %v491, %v490
    %v507 = vpack.c.b16 %v493, %v492
    %v508 = vpack.c.b16 %v495, %v494
    %v509 = vpack.c.b16 %v497, %v496
    %v510 = vpack.c.b16 %v499, %v498
    %v511 = vpack.c.b16 %v501, %v500
    %v512 = vpack.c.b16 %v503, %v502
    %v513 = vpack.c.b16 %v505, %v504
    %522 = vmatpush.bf16.msra.mxu0 %v513
    %523 = vmatpush.bf16.msra.mxu0 %v512
    %524 = vmatpush.bf16.msra.mxu0 %v511
    %525 = vmatpush.bf16.msra.mxu0 %v510
    %526 = vmatpush.bf16.msra.mxu0 %v509
    %527 = vmatpush.bf16.msra.mxu0 %v508
    %528 = vmatpush.bf16.msra.mxu0 %v507
    %529 = vmatpush.bf16.msra.mxu0 %v506
    %530 = vmatmul.bf16.gmra.mxu0 %v452
    %v531 = vpop.f32.mrf.mxu0
    %v532 = vadd.f32 %v472, %v531
    %v533 = vpop.f32.mrf.mxu0
    %v534 = vadd.f32 %v472, %v533
    %535 = vmatmul.bf16.gmra.mxu0 %v453
    %v536 = vpop.f32.mrf.mxu0
    %v537 = vadd.f32 %v472, %v536
    %v538 = vpop.f32.mrf.mxu0
    %v539 = vadd.f32 %v472, %v538
    %540 = vdwg.mxu0
    %541 = vst [vmem:[#allocation8] sm:$0xff] %v532
    %542 = vst [vmem:[#allocation8 + $0x8] sm:$0xff] %v534
    %543 = vst [vmem:[#allocation8 + $0x10] sm:$0xff] %v537
    %544 = vst [vmem:[#allocation8 + $0x18] sm:$0xff] %v539
    %v545 = vld [vmem:[%s2] sm:$0xff]
    %v546 = vld [vmem:[%s2 + $0x8] sm:$0xff]
    %v547 = vld [vmem:[%s2 + $0x10] sm:$0xff]
    %v548 = vld [vmem:[%s2 + $0x18] sm:$0xff]
    %v549 = vld [vmem:[%s2 + $0x20] sm:$0xff]
    %v550 = vld [vmem:[%s2 + $0x28] sm:$0xff]
    %v551 = vld [vmem:[%s2 + $0x30] sm:$0xff]
    %v552 = vld [vmem:[%s2 + $0x38] sm:$0xff]
    %v553 = vld [vmem:[%s2 + $0x40] sm:$0xff]
    %v554 = vld [vmem:[%s2 + $0x48] sm:$0xff]
    %v555 = vld [vmem:[%s2 + $0x50] sm:$0xff]
    %v556 = vld [vmem:[%s2 + $0x58] sm:$0xff]
    %v557 = vld [vmem:[%s2 + $0x60] sm:$0xff]
    %v558 = vld [vmem:[%s2 + $0x68] sm:$0xff]
    %v559 = vld [vmem:[%s2 + $0x70] sm:$0xff]
    %v560 = vld [vmem:[%s2 + $0x78] sm:$0xff]
    %v561 = vpack.c.bf16 %v546, %v545
    %v562 = vpack.c.bf16 %v548, %v547
    %v563 = vpack.c.bf16 %v550, %v549
    %v564 = vpack.c.bf16 %v552, %v551
    %v565 = vpack.c.bf16 %v554, %v553
    %v566 = vpack.c.bf16 %v556, %v555
    %v567 = vpack.c.bf16 %v558, %v557
    %v568 = vpack.c.bf16 %v560, %v559
    %v569 = vld [vmem:[%s3] sm:$0xf]
    %v570 = vld [vmem:[%s3 + $0x4] sm:$0xf]
    %v571 = vld [vmem:[%s3 + $0x8] sm:$0xf]
    %v572 = vld [vmem:[%s3 + $0xc] sm:$0xf]
    %v573 = vld [vmem:[%s4] sm:$0x1]
    %v575 = vperm.slane %v573, 0
    %v581 = vunpack.c.l.b16 %v569
    %v582 = vunpack.c.l.b16 %v570
    %v583 = vunpack.c.l.b16 %v571
    %v584 = vunpack.c.l.b16 %v572
    %v585 = vpack.c.b16 %v582, %v581
    %v586 = vpack.c.b16 %v584, %v583
    %v590 = vsel %vm84, %v561, 0
    %v593 = vsel %vm84, %v562, 0
    %v596 = vsel %vm84, %v563, 0
    %v599 = vsel %vm84, %v564, 0
    %v602 = vsel %vm84, %v565, 0
    %v605 = vsel %vm84, %v566, 0
    %v608 = vsel %vm84, %v567, 0
    %v611 = vsel %vm84, %v568, 0
    %613 = vmatpush.bf16.msra.mxu0 0
    %614 = vmatpush.bf16.msra.mxu0 0
    %615 = vmatpush.bf16.msra.mxu0 0
    %616 = vmatpush.bf16.msra.mxu0 0
    %617 = vmatpush.bf16.msra.mxu0 0
    %618 = vmatpush.bf16.msra.mxu0 0
    %619 = vmatpush.bf16.msra.mxu0 %v586
    %620 = vmatpush.bf16.msra.mxu0 %v585
    %621 = vmatmul.bf16.gmra.mxu0 %v590
    %v622 = vpop.f32.mrf.mxu0
    %v623 = vadd.f32 %v575, %v622
    %v624 = vpop.f32.mrf.mxu0
    %v625 = vadd.f32 %v575, %v624
    %626 = vmatmul.bf16.gmra.mxu0 %v593
    %v627 = vpop.f32.mrf.mxu0
    %v628 = vadd.f32 %v575, %v627
    %v629 = vpop.f32.mrf.mxu0
    %v630 = vadd.f32 %v575, %v629
    %631 = vmatmul.bf16.gmra.mxu0 %v596
    %v632 = vpop.f32.mrf.mxu0
    %v633 = vadd.f32 %v575, %v632
    %v634 = vpop.f32.mrf.mxu0
    %v635 = vadd.f32 %v575, %v634
    %636 = vmatmul.bf16.gmra.mxu0 %v599
    %v637 = vpop.f32.mrf.mxu0
    %v638 = vadd.f32 %v575, %v637
    %v639 = vpop.f32.mrf.mxu0
    %v640 = vadd.f32 %v575, %v639
    %641 = vmatmul.bf16.gmra.mxu0 %v602
    %v642 = vpop.f32.mrf.mxu0
    %v643 = vadd.f32 %v575, %v642
    %v644 = vpop.f32.mrf.mxu0
    %v645 = vadd.f32 %v575, %v644
    %646 = vmatmul.bf16.gmra.mxu0 %v605
    %v647 = vpop.f32.mrf.mxu0
    %v648 = vadd.f32 %v575, %v647
    %v649 = vpop.f32.mrf.mxu0
    %v650 = vadd.f32 %v575, %v649
    %651 = vmatmul.bf16.gmra.mxu0 %v608
    %v652 = vpop.f32.mrf.mxu0
    %v653 = vadd.f32 %v575, %v652
    %v654 = vpop.f32.mrf.mxu0
    %v655 = vadd.f32 %v575, %v654
    %656 = vmatmul.bf16.gmra.mxu0 %v611
    %v657 = vpop.f32.mrf.mxu0
    %v658 = vadd.f32 %v575, %v657
    %v659 = vpop.f32.mrf.mxu0
    %v660 = vadd.f32 %v575, %v659
    %661 = vdwg.mxu0
    %v662 = vmax.f32 %v623, 0.0
    %v663 = vmax.f32 %v625, 0.0
    %v664 = vmax.f32 %v628, 0.0
    %v665 = vmax.f32 %v630, 0.0
    %v666 = vmax.f32 %v633, 0.0
    %v667 = vmax.f32 %v635, 0.0
    %v668 = vmax.f32 %v638, 0.0
    %v669 = vmax.f32 %v640, 0.0
    %v670 = vmax.f32 %v643, 0.0
    %v671 = vmax.f32 %v645, 0.0
    %v672 = vmax.f32 %v648, 0.0
    %v673 = vmax.f32 %v650, 0.0
    %v674 = vmax.f32 %v653, 0.0
    %v675 = vmax.f32 %v655, 0.0
    %v676 = vmax.f32 %v658, 0.0
    %v677 = vmax.f32 %v660, 0.0
    %v678 = vpack.c.bf16 %v663, %v662
    %v679 = vpack.c.bf16 %v665, %v664
    %v680 = vpack.c.bf16 %v667, %v666
    %v681 = vpack.c.bf16 %v669, %v668
    %v682 = vpack.c.bf16 %v671, %v670
    %v683 = vpack.c.bf16 %v673, %v672
    %v684 = vpack.c.bf16 %v675, %v674
    %v685 = vpack.c.bf16 %v677, %v676
    %v686 = vld [vmem:[%s116] sm:$0xf]
    %v687 = vld [vmem:[%s116 + $0x4] sm:$0xf]
    %v688 = vld [vmem:[%s116 + $0x8] sm:$0xf]
    %v689 = vld [vmem:[%s116 + $0xc] sm:$0xf]
    %v690 = vld [vmem:[%s116 + $0x10] sm:$0xf]
    %v691 = vld [vmem:[%s116 + $0x14] sm:$0xf]
    %v692 = vld [vmem:[%s116 + $0x18] sm:$0xf]
    %v693 = vld [vmem:[%s116 + $0x1c] sm:$0xf]
    %v694 = vld [vmem:[%s116 + $0x20] sm:$0xf]
    %v695 = vld [vmem:[%s116 + $0x24] sm:$0xf]
    %v696 = vld [vmem:[%s116 + $0x28] sm:$0xf]
    %v697 = vld [vmem:[%s116 + $0x2c] sm:$0xf]
    %v698 = vld [vmem:[%s116 + $0x30] sm:$0xf]
    %v699 = vld [vmem:[%s116 + $0x34] sm:$0xf]
    %v700 = vld [vmem:[%s116 + $0x38] sm:$0xf]
    %v701 = vld [vmem:[%s116 + $0x3c] sm:$0xf]
    %v702 = vld [vmem:[%s133] sm:$0x1]
    %v704 = vperm.slane %v702, 0
    %v722 = vunpack.c.l.b16 %v686
    %v723 = vunpack.c.l.b16 %v687
    %v724 = vunpack.c.l.b16 %v688
    %v725 = vunpack.c.l.b16 %v689
    %v726 = vunpack.c.l.b16 %v690
    %v727 = vunpack.c.l.b16 %v691
    %v728 = vunpack.c.l.b16 %v692
    %v729 = vunpack.c.l.b16 %v693
    %v730 = vunpack.c.l.b16 %v694
    %v731 = vunpack.c.l.b16 %v695
    %v732 = vunpack.c.l.b16 %v696
    %v733 = vunpack.c.l.b16 %v697
    %v734 = vunpack.c.l.b16 %v698
    %v735 = vunpack.c.l.b16 %v699
    %v736 = vunpack.c.l.b16 %v700
    %v737 = vunpack.c.l.b16 %v701
    %v738 = vpack.c.b16 %v723, %v722
    %v739 = vpack.c.b16 %v725, %v724
    %v740 = vpack.c.b16 %v727, %v726
    %v741 = vpack.c.b16 %v729, %v728
    %v742 = vpack.c.b16 %v731, %v730
    %v743 = vpack.c.b16 %v733, %v732
    %v744 = vpack.c.b16 %v735, %v734
    %v745 = vpack.c.b16 %v737, %v736
    %754 = vmatpush.bf16.msra.mxu0 %v745
    %755 = vmatpush.bf16.msra.mxu0 %v744
    %756 = vmatpush.bf16.msra.mxu0 %v743
    %757 = vmatpush.bf16.msra.mxu0 %v742
    %758 = vmatpush.bf16.msra.mxu0 %v741
    %759 = vmatpush.bf16.msra.mxu0 %v740
    %760 = vmatpush.bf16.msra.mxu0 %v739
    %761 = vmatpush.bf16.msra.mxu0 %v738
    %762 = vmatmul.bf16.gmra.mxu0 %v678
    %v763 = vpop.f32.mrf.mxu0
    %v764 = vadd.f32 %v704, %v763
    %v765 = vpop.f32.mrf.mxu0
    %v766 = vadd.f32 %v704, %v765
    %767 = vmatmul.bf16.gmra.mxu0 %v679
    %v768 = vpop.f32.mrf.mxu0
    %v769 = vadd.f32 %v704, %v768
    %v770 = vpop.f32.mrf.mxu0
    %v771 = vadd.f32 %v704, %v770
    %772 = vmatmul.bf16.gmra.mxu0 %v680
    %v773 = vpop.f32.mrf.mxu0
    %v774 = vadd.f32 %v704, %v773
    %v775 = vpop.f32.mrf.mxu0
    %v776 = vadd.f32 %v704, %v775
    %777 = vmatmul.bf16.gmra.mxu0 %v681
    %v778 = vpop.f32.mrf.mxu0
    %v779 = vadd.f32 %v704, %v778
    %v780 = vpop.f32.mrf.mxu0
    %v781 = vadd.f32 %v704, %v780
    %782 = vmatmul.bf16.gmra.mxu0 %v682
    %v783 = vpop.f32.mrf.mxu0
    %v784 = vadd.f32 %v704, %v783
    %v785 = vpop.f32.mrf.mxu0
    %v786 = vadd.f32 %v704, %v785
    %787 = vmatmul.bf16.gmra.mxu0 %v683
    %v788 = vpop.f32.mrf.mxu0
    %v789 = vadd.f32 %v704, %v788
    %v790 = vpop.f32.mrf.mxu0
    %v791 = vadd.f32 %v704, %v790
    %792 = vmatmul.bf16.gmra.mxu0 %v684
    %v793 = vpop.f32.mrf.mxu0
    %v794 = vadd.f32 %v704, %v793
    %v795 = vpop.f32.mrf.mxu0
    %v796 = vadd.f32 %v704, %v795
    %797 = vmatmul.bf16.gmra.mxu0 %v685
    %v798 = vpop.f32.mrf.mxu0
    %v799 = vadd.f32 %v704, %v798
    %v800 = vpop.f32.mrf.mxu0
    %v801 = vadd.f32 %v704, %v800
    %802 = vdwg.mxu0
    %v803 = vmax.f32 %v764, 0.0
    %v804 = vmax.f32 %v766, 0.0
    %v805 = vmax.f32 %v769, 0.0
    %v806 = vmax.f32 %v771, 0.0
    %v807 = vmax.f32 %v774, 0.0
    %v808 = vmax.f32 %v776, 0.0
    %v809 = vmax.f32 %v779, 0.0
    %v810 = vmax.f32 %v781, 0.0
    %v811 = vmax.f32 %v784, 0.0
    %v812 = vmax.f32 %v786, 0.0
    %v813 = vmax.f32 %v789, 0.0
    %v814 = vmax.f32 %v791, 0.0
    %v815 = vmax.f32 %v794, 0.0
    %v816 = vmax.f32 %v796, 0.0
    %v817 = vmax.f32 %v799, 0.0
    %v818 = vmax.f32 %v801, 0.0
    %v819 = vpack.c.bf16 %v804, %v803
    %v820 = vpack.c.bf16 %v806, %v805
    %v821 = vpack.c.bf16 %v808, %v807
    %v822 = vpack.c.bf16 %v810, %v809
    %v823 = vpack.c.bf16 %v812, %v811
    %v824 = vpack.c.bf16 %v814, %v813
    %v825 = vpack.c.bf16 %v816, %v815
    %v826 = vpack.c.bf16 %v818, %v817
    %v827 = vld [vmem:[%s211] sm:$0xf]
    %v828 = vld [vmem:[%s211 + $0x4] sm:$0xf]
    %v829 = vld [vmem:[%s211 + $0x8] sm:$0xf]
    %v830 = vld [vmem:[%s211 + $0xc] sm:$0xf]
    %v831 = vld [vmem:[%s211 + $0x10] sm:$0xf]
    %v832 = vld [vmem:[%s211 + $0x14] sm:$0xf]
    %v833 = vld [vmem:[%s211 + $0x18] sm:$0xf]
    %v834 = vld [vmem:[%s211 + $0x1c] sm:$0xf]
    %v835 = vld [vmem:[%s211 + $0x20] sm:$0xf]
    %v836 = vld [vmem:[%s211 + $0x24] sm:$0xf]
    %v837 = vld [vmem:[%s211 + $0x28] sm:$0xf]
    %v838 = vld [vmem:[%s211 + $0x2c] sm:$0xf]
    %v839 = vld [vmem:[%s211 + $0x30] sm:$0xf]
    %v840 = vld [vmem:[%s211 + $0x34] sm:$0xf]
    %v841 = vld [vmem:[%s211 + $0x38] sm:$0xf]
    %v842 = vld [vmem:[%s211 + $0x3c] sm:$0xf]
    %v843 = vld [vmem:[%s228] sm:$0x1]
    %v845 = vperm.slane %v843, 0
    %v863 = vunpack.c.l.b16 %v827
    %v864 = vunpack.c.l.b16 %v828
    %v865 = vunpack.c.l.b16 %v829
    %v866 = vunpack.c.l.b16 %v830
    %v867 = vunpack.c.l.b16 %v831
    %v868 = vunpack.c.l.b16 %v832
    %v869 = vunpack.c.l.b16 %v833
    %v870 = vunpack.c.l.b16 %v834
    %v871 = vunpack.c.l.b16 %v835
    %v872 = vunpack.c.l.b16 %v836
    %v873 = vunpack.c.l.b16 %v837
    %v874 = vunpack.c.l.b16 %v838
    %v875 = vunpack.c.l.b16 %v839
    %v876 = vunpack.c.l.b16 %v840
    %v877 = vunpack.c.l.b16 %v841
    %v878 = vunpack.c.l.b16 %v842
    %v879 = vpack.c.b16 %v864, %v863
    %v880 = vpack.c.b16 %v866, %v865
    %v881 = vpack.c.b16 %v868, %v867
    %v882 = vpack.c.b16 %v870, %v869
    %v883 = vpack.c.b16 %v872, %v871
    %v884 = vpack.c.b16 %v874, %v873
    %v885 = vpack.c.b16 %v876, %v875
    %v886 = vpack.c.b16 %v878, %v877
    %895 = vmatpush.bf16.msra.mxu0 %v886
    %896 = vmatpush.bf16.msra.mxu0 %v885
    %897 = vmatpush.bf16.msra.mxu0 %v884
    %898 = vmatpush.bf16.msra.mxu0 %v883
    %899 = vmatpush.bf16.msra.mxu0 %v882
    %900 = vmatpush.bf16.msra.mxu0 %v881
    %901 = vmatpush.bf16.msra.mxu0 %v880
    %902 = vmatpush.bf16.msra.mxu0 %v879
    %903 = vmatmul.bf16.gmra.mxu0 %v819
    %v904 = vpop.f32.mrf.mxu0
    %v905 = vadd.f32 %v845, %v904
    %v906 = vpop.f32.mrf.mxu0
    %v907 = vadd.f32 %v845, %v906
    %908 = vmatmul.bf16.gmra.mxu0 %v820
    %v909 = vpop.f32.mrf.mxu0
    %v910 = vadd.f32 %v845, %v909
    %v911 = vpop.f32.mrf.mxu0
    %v912 = vadd.f32 %v845, %v911
    %913 = vmatmul.bf16.gmra.mxu0 %v821
    %v914 = vpop.f32.mrf.mxu0
    %v915 = vadd.f32 %v845, %v914
    %v916 = vpop.f32.mrf.mxu0
    %v917 = vadd.f32 %v845, %v916
    %918 = vmatmul.bf16.gmra.mxu0 %v822
    %v919 = vpop.f32.mrf.mxu0
    %v920 = vadd.f32 %v845, %v919
    %v921 = vpop.f32.mrf.mxu0
    %v922 = vadd.f32 %v845, %v921
    %923 = vmatmul.bf16.gmra.mxu0 %v823
    %v924 = vpop.f32.mrf.mxu0
    %v925 = vadd.f32 %v845, %v924
    %v926 = vpop.f32.mrf.mxu0
    %v927 = vadd.f32 %v845, %v926
    %928 = vmatmul.bf16.gmra.mxu0 %v824
    %v929 = vpop.f32.mrf.mxu0
    %v930 = vadd.f32 %v845, %v929
    %v931 = vpop.f32.mrf.mxu0
    %v932 = vadd.f32 %v845, %v931
    %933 = vmatmul.bf16.gmra.mxu0 %v825
    %v934 = vpop.f32.mrf.mxu0
    %v935 = vadd.f32 %v845, %v934
    %v936 = vpop.f32.mrf.mxu0
    %v937 = vadd.f32 %v845, %v936
    %938 = vmatmul.bf16.gmra.mxu0 %v826
    %v939 = vpop.f32.mrf.mxu0
    %v940 = vadd.f32 %v845, %v939
    %v941 = vpop.f32.mrf.mxu0
    %v942 = vadd.f32 %v845, %v941
    %943 = vdwg.mxu0
    %944 = vst [vmem:[%s7] sm:$0xff] %v905
    %945 = vst [vmem:[%s7 + $0x8] sm:$0xff] %v907
    %946 = vst [vmem:[%s7 + $0x10] sm:$0xff] %v910
    %947 = vst [vmem:[%s7 + $0x18] sm:$0xff] %v912
    %948 = vst [vmem:[%s7 + $0x20] sm:$0xff] %v915
    %949 = vst [vmem:[%s7 + $0x28] sm:$0xff] %v917
    %950 = vst [vmem:[%s7 + $0x30] sm:$0xff] %v920
    %951 = vst [vmem:[%s7 + $0x38] sm:$0xff] %v922
    %952 = vst [vmem:[%s7 + $0x40] sm:$0xff] %v925
    %953 = vst [vmem:[%s7 + $0x48] sm:$0xff] %v927
    %954 = vst [vmem:[%s7 + $0x50] sm:$0xff] %v930
    %955 = vst [vmem:[%s7 + $0x58] sm:$0xff] %v932
    %956 = vst [vmem:[%s7 + $0x60] sm:$0xff] %v935
    %957 = vst [vmem:[%s7 + $0x68] sm:$0xff] %v937
    %958 = vst [vmem:[%s7 + $0x70] sm:$0xff] %v940
    %959 = vst [vmem:[%s7 + $0x78] sm:$0xff] %v942
    // Predicated region
    $region30: #{dca_encoder_forward.1} parent=1 // pred_check
      _
    $region31: #{dca_encoder_forward.1} parent=1 // pred_check_branch
      %961 = sbr.rel (0) target = $region33
    $region32: #{dca_encoder_forward.1} parent=1 // pred_region
      %963 = vsyncadd [#allocation4], 0
      %s964 = sshll.u32 [#allocation7], 4
      %s965 = int_to_ptr.vmem [resolvable:$true] %s964
      %s966 = sshll.u32 %s5, 4
      %s967 = int_to_ptr.hbm [resolvable:$true] %s966
      %972 = dma.vmem_to_hbm [thread:$0]  %s965, 512, %s967, [#allocation4], 128, 128, 8
    $region33: #{dca_encoder_forward.1} parent=1 // pred_fallthru
      _
    // Predicated region
    $region34: #{dca_encoder_forward.1} parent=1 // pred_check
      _
    $region35: #{dca_encoder_forward.1} parent=1 // pred_check_branch
      %974 = sbr.rel (0) target = $region37
    $region36: #{dca_encoder_forward.1} parent=1 // pred_region
      %976 = vsyncadd [#allocation9], 0
      %s977 = sshll.u32 [#allocation8], 4
      %s978 = int_to_ptr.vmem [resolvable:$true] %s977
      %s979 = sshll.u32 %s6, 4
      %s980 = int_to_ptr.hbm [resolvable:$true] %s979
      %985 = dma.vmem_to_hbm [thread:$0]  %s978, 512, %s980, [#allocation9], 128, 128, 8
    $region37: #{dca_encoder_forward.1} parent=1 // pred_fallthru
      _
    // Predicated region
    $region38: #{dca_encoder_forward.1} parent=1 // pred_check
      _
    $region39: #{dca_encoder_forward.1} parent=1 // pred_check_branch
      %987 = sbr.rel (0) target = $region41
    $region40: #{dca_encoder_forward.1} parent=1 // pred_region
      _
    $region41: #{dca_encoder_forward.1} parent=1 // pred_fallthru
      _
    // Predicated region
    $region42: #{dca_encoder_forward.1} parent=1 // pred_check
      _
    $region43: #{dca_encoder_forward.1} parent=1 // pred_check_branch
      %989 = sbr.rel (0) target = $region45
    $region44: #{dca_encoder_forward.1} parent=1 // pred_region
      %991 = dma.done [#allocation4], 512
    $region45: #{dca_encoder_forward.1} parent=1 // pred_fallthru
      _
    // Predicated region
    $region46: #{dca_encoder_forward.1} parent=1 // pred_check
      _
    $region47: #{dca_encoder_forward.1} parent=1 // pred_check_branch
      %993 = sbr.rel (0) target = $region49
    $region48: #{dca_encoder_forward.1} parent=1 // pred_region
      %995 = dma.done [#allocation9], 512
    $region49: #{dca_encoder_forward.1} parent=1 // pred_fallthru
      _
    // Predicated region
    $region50: #{dca_encoder_forward.1} parent=1 // pred_check
      _
    $region51: #{dca_encoder_forward.1} parent=1 // pred_check_branch
      %997 = sbr.rel (0) target = $region53
    $region52: #{dca_encoder_forward.1} parent=1 // pred_region
      _
    $region53: #{dca_encoder_forward.1} parent=1 // pred_fallthru
      _
    %998 = vsyncpa [#allocation3], 1
    %999 = vsyncpa [#allocation6], 1
    %1000 = vsyncpa [#allocation4], 1
    %1001 = vsyncpa [#allocation9], 1

</llo_original>
